<compile_context>
chip_gen: v7x
topology: tpu7x:2x2x1
jax: 0.10.0
libtpu: 0.0.40
codegen_flags: <defaults>
</compile_context>

<pallas_src>
import jax
import jax.numpy as jnp
from jax.experimental import pallas as pl
from jax.experimental.pallas import tpu as pltpu


def _mclb_kernel(q_ref, w_ref, b_ref, ctx_ref, mask_ref, out_ref,
                 qact_ref, m_ref, l_ref):
    si = pl.program_id(1)
    n_s = pl.num_programs(1)

    # ---- first S step for this batch tile: compute tanh(linear), init state.
    @pl.when(si == 0)
    def _init():
        qact_ref[...] = jnp.tanh(
            jax.lax.dot_general(
                q_ref[...], w_ref[...],
                dimension_numbers=(((1,), (1,)), ((), ())),   # query·weight^T, no transpose materialized
                preferred_element_type=jnp.float32,
            )
            + b_ref[...]
        )                                                     # [TB, at_dim]
        m_ref[...] = jnp.full_like(m_ref, -1e30)              # running max
        l_ref[...] = jnp.zeros_like(l_ref)                    # running denom
        out_ref[...] = jnp.zeros_like(out_ref)                # running numerator

    ctx = ctx_ref[...]                                        # [TS, TB, D]
    q = qact_ref[...]                                         # [TB, D]
    mask_sb = mask_ref[...].astype(jnp.float32).T > 0.5       # [TS, TB] (tiny transpose)

    # scores[s, b] = sum_d ctx[s, b, d] * q[b, d]   (lane reduce over D)
    scores = jnp.sum(ctx * q[None, :, :], axis=-1)            # [TS, TB]
    scores = jnp.where(mask_sb, jnp.float32(-1e30), scores)   # finite fill, no NaNs

    # ---- online softmax update along S.
    m_prev = m_ref[...]                                       # [1, TB]
    m_new = jnp.maximum(m_prev, jnp.max(scores, axis=0, keepdims=True))
    alpha = jnp.exp(m_prev - m_new)                           # [1, TB]
    # zero masked terms: identical to torch for partially-masked rows (their
    # exp underflows to 0 anyway) and gives 0-output for fully-masked rows.
    e = jnp.where(mask_sb, jnp.float32(0.0), jnp.exp(scores - m_new))   # [TS, TB]

    l_ref[...] = alpha * l_ref[...] + jnp.sum(e, axis=0, keepdims=True)
    out_ref[...] = alpha.T * out_ref[...] + jnp.sum(e[:, :, None] * ctx, axis=0)
    m_ref[...] = m_new

    # ---- last S step: normalize the resident output block.
    @pl.when(si == n_s - 1)
    def _finalize():
        l = l_ref[...]                                        # [1, TB]
        denom = jnp.where(l > 0.0, l, jnp.float32(1.0))       # fully-masked rows -> 0
        out_ref[...] = (out_ref[...] * pl.reciprocal(denom).T).astype(out_ref.dtype)


def _vmem_capacity_bytes():
    try:
        cap = getattr(pltpu.get_tpu_info(), "vmem_capacity_bytes", None)
        if cap:
            return int(cap)
    except Exception:
        pass
    return 64 * 1024 * 1024   # conservative default (v7x per-TensorCore VMEM)


def _pick_tiles(B, S, at_dim):
    """Generation-aware (TB, TS) selection with lane-padding-corrected VMEM math."""
    cap = _vmem_capacity_bytes()
    vmem_limit = min((cap * 3) // 4, 96 * 1024 * 1024)        # 96 MiB v5e/v6e, 48 MiB v7x
    ctx_budget = vmem_limit // 5                              # 2 pipeline bufs + temp/scratch headroom

    d_pad = ((at_dim + 127) // 128) * 128                     # lane padding of the last dim
    row_bytes = 4 * d_pad                                     # one (s, b) ctx row in VMEM, f32

    tb_cands = sorted({t for t in range(8, min(B, 256) + 1, 8) if B % t == 0},
                      reverse=True)
    if not tb_cands:
        tb_cands = [B]                                        # B < 8 or no multiple-of-8 divisor
    # mask block's last dim is TS: must be a multiple of 128 or the full S.
    ts_cands = sorted({t for t in range(128, S, 128) if S % t == 0} | {S},
                      reverse=True)

    def largest_fitting_ts(tb):
        for ts in ts_cands:
            if ts * tb * row_bytes <= ctx_budget:
                return ts
        return None

    # v7x (<=64 MiB VMEM/TC, 2 TCs): prefer >=4 batch steps so the "parallel"
    # axis splits across both cores and still pipelines; otherwise >=2 steps.
    step_prefs = (4, 2, 1) if cap <= 64 * 1024 * 1024 else (2, 1)
    for min_steps in step_prefs:
        for tb in tb_cands:
            if B // tb < min_steps:
                continue
            ts = largest_fitting_ts(tb)
            if ts is not None:
                return tb, ts, vmem_limit
    # Last resort: smallest expressible tiles.
    return tb_cands[-1], ts_cands[-1], vmem_limit


def mclb_forward(query, context, mask, weight, bias):
    """query [B, in_dim] f32, context [S, B, at_dim] f32 (torch layout),
    mask [B, S] bool (True = masked out), weight [at_dim, in_dim], bias [at_dim]."""
    B, in_dim = query.shape
    S, Bc, at_dim = context.shape
    assert Bc == B and mask.shape == (B, S)

    TB, TS, vmem_limit = _pick_tiles(B, S, at_dim)
    grid = (B // TB, S // TS)

    mask_i8 = mask.astype(jnp.int8)                           # 4x smaller DMA than f32
    bias2d = bias.reshape(1, at_dim).astype(jnp.float32)

    cost = pl.CostEstimate(
        flops=2 * B * in_dim * at_dim + 4 * S * B * at_dim + 8 * S * B,
        transcendentals=S * B + B * at_dim,
        bytes_accessed=4 * (S * B * at_dim + B * in_dim + at_dim * in_dim
                            + B * at_dim + at_dim) + B * S,
    )

    return pl.pallas_call(
        _mclb_kernel,
        out_shape=jax.ShapeDtypeStruct((B, at_dim), jnp.float32),
        grid=grid,
        in_specs=[
            pl.BlockSpec((TB, in_dim), lambda b, s: (b, 0)),          # query tile
            pl.BlockSpec((at_dim, in_dim), lambda b, s: (0, 0)),      # weight (VMEM-resident)
            pl.BlockSpec((1, at_dim), lambda b, s: (0, 0)),           # bias (VMEM-resident)
            pl.BlockSpec((TS, TB, at_dim), lambda b, s: (s, b, 0)),   # ctx, native [S,B,D]
            pl.BlockSpec((TB, TS), lambda b, s: (b, s)),              # mask tile (int8)
        ],
        out_specs=pl.BlockSpec((TB, at_dim), lambda b, s: (b, 0)),    # resident accumulator
        scratch_shapes=[
            pltpu.VMEM((TB, at_dim), jnp.float32),                    # tanh(linear(query))
            pltpu.VMEM((1, TB), jnp.float32),                         # running max
            pltpu.VMEM((1, TB), jnp.float32),                         # running denom
        ],
        compiler_params=pltpu.CompilerParams(
            dimension_semantics=("parallel", "arbitrary"),
            vmem_limit_bytes=vmem_limit,
        ),
        cost_estimate=cost,
    )(query.astype(jnp.float32), weight.astype(jnp.float32), bias2d,
      context.astype(jnp.float32), mask_i8)


def mclb_reference(query, context, mask, weight, bias):
    ctx = jnp.transpose(context, (1, 0, 2))                   # [B, S, at_dim]
    q = jnp.tanh(query @ weight.T + bias)
    scores = jnp.einsum("bsd,bd->bs", ctx, q)
    scores = jnp.where(mask, -jnp.inf, scores)
    p = jax.nn.softmax(scores, axis=-1)
    p = jnp.where(mask, 0.0, p)
    return jnp.einsum("bs,bsd->bd", p, ctx)


if __name__ == "__main__":
    B, S = 4, 8
    in_dim, at_dim = 32, 32

    key = jax.random.PRNGKey(0)
    k_q, k_c, k_w, k_b = jax.random.split(key, 4)

    query = jax.random.normal(k_q, (B, in_dim), dtype=jnp.float32)
    context = jax.random.normal(k_c, (S, B, at_dim), dtype=jnp.float32)
    # torch Linear layout: weight [at_dim, in_dim], bias [at_dim]
    weight = jax.random.normal(k_w, (at_dim, in_dim), dtype=jnp.float32) * 0.1
    bias = jax.random.normal(k_b, (at_dim,), dtype=jnp.float32) * 0.1
    # mask: pad out the tail of each sequence (varying valid lengths per batch)
    lengths = jnp.array([8, 6, 3, 5], dtype=jnp.int32)
    mask = jnp.arange(S)[None, :] >= lengths[:, None]         # [B, S] bool, True = masked

    out = jax.block_until_ready(mclb_forward(query, context, mask, weight, bias))
    ref = mclb_reference(query, context, mask, weight, bias)

    assert out.shape == (B, at_dim)
    assert jnp.allclose(out, ref, atol=1e-5, rtol=1e-5), "mismatch vs reference"
    print("KERNEL_OK")
</pallas_src>

<mosaic_0001>
module attributes {stable_mosaic.version = 11 : i64} {
  func.func @_mclb_kernel(%arg0: i32, %arg1: i32, %arg2: memref<4x32xf32, #tpu.memory_space<vmem>>, %arg3: memref<32x32xf32, #tpu.memory_space<vmem>>, %arg4: memref<1x32xf32, #tpu.memory_space<vmem>>, %arg5: memref<8x4x32xf32, #tpu.memory_space<vmem>>, %arg6: memref<4x8xi8, #tpu.memory_space<vmem>>, %arg7: memref<4x32xf32, #tpu.memory_space<vmem>>, %arg8: memref<4x32xf32, #tpu.memory_space<vmem>>, %arg9: memref<1x4xf32, #tpu.memory_space<vmem>>, %arg10: memref<1x4xf32, #tpu.memory_space<vmem>>) attributes {dimension_semantics = [#tpu.dimension_semantics<parallel>, #tpu.dimension_semantics<arbitrary>], iteration_bounds = array<i64: 1, 1>, scalar_prefetch = 0 : i64, scratch_operands = 3 : i64, tpu.core_type = #tpu.core_type<tc>, window_params = [{transform_indices = @transform_0, window_bounds = array<i64: 4, 32>}, {pipeline_mode = #tpu.pipeline_mode<synchronous>, transform_indices = @transform_1, window_bounds = array<i64: 32, 32>}, {pipeline_mode = #tpu.pipeline_mode<synchronous>, transform_indices = @transform_2, window_bounds = array<i64: 1, 32>}, {transform_indices = @transform_3, window_bounds = array<i64: 8, 4, 32>}, {transform_indices = @transform_4, window_bounds = array<i64: 4, 8>}, {transform_indices = @transform_5, window_bounds = array<i64: 4, 32>}]} {
    %c0_i32 = arith.constant 0 : i32
    %0 = arith.cmpi eq, %arg1, %c0_i32 : i32
    %1 = arith.extui %0 : i1 to i32
    %c0_i32_0 = arith.constant 0 : i32
    %2 = arith.cmpi ne, %1, %c0_i32_0 : i32
    scf.if %2 {
      %c0_27 = arith.constant 0 : index
      %c0_28 = arith.constant 0 : index
      %47 = vector.load %arg2[%c0_27, %c0_28] : memref<4x32xf32, #tpu.memory_space<vmem>>, vector<4x32xf32>
      %c0_29 = arith.constant 0 : index
      %c0_30 = arith.constant 0 : index
      %48 = vector.load %arg3[%c0_29, %c0_30] : memref<32x32xf32, #tpu.memory_space<vmem>>, vector<32x32xf32>
      %cst_31 = arith.constant dense<0.000000e+00> : vector<4x32xf32>
      %49 = tpu.matmul %47, %48, %cst_31 {dimension_numbers = #tpu.dot_dimension_numbers<[1], [1], [0], [0], [0, 0, 1, 0], [], []>} : vector<4x32xf32>, vector<32x32xf32>, vector<4x32xf32> -> vector<4x32xf32>
      %c0_32 = arith.constant 0 : index
      %c0_33 = arith.constant 0 : index
      %50 = vector.load %arg4[%c0_32, %c0_33] : memref<1x32xf32, #tpu.memory_space<vmem>>, vector<1x32xf32>
      %51 = vector.broadcast %50 : vector<1x32xf32> to vector<4x32xf32>
      %52 = arith.addf %49, %51 : vector<4x32xf32>
      %53 = math.tanh %52 : vector<4x32xf32>
      %c0_34 = arith.constant 0 : index
      %c0_35 = arith.constant 0 : index
      %54 = vector.load %arg8[%c0_34, %c0_35] : memref<4x32xf32, #tpu.memory_space<vmem>>, vector<4x32xf32>
      tpu.vector_store %arg8[%c0_34, %c0_35], %53 {strides = array<i32>} : memref<4x32xf32, #tpu.memory_space<vmem>>, vector<4x32xf32>,
      %cst_36 = arith.constant -1.000000e+30 : f32
      %55 = vector.broadcast %cst_36 : f32 to vector<1x4xf32>
      %c0_37 = arith.constant 0 : index
      %c0_38 = arith.constant 0 : index
      %56 = vector.load %arg9[%c0_37, %c0_38] : memref<1x4xf32, #tpu.memory_space<vmem>>, vector<1x4xf32>
      tpu.vector_store %arg9[%c0_37, %c0_38], %55 {strides = array<i32>} : memref<1x4xf32, #tpu.memory_space<vmem>>, vector<1x4xf32>,
      %cst_39 = arith.constant 0.000000e+00 : f32
      %57 = vector.broadcast %cst_39 : f32 to vector<1x4xf32>
      %c0_40 = arith.constant 0 : index
      %c0_41 = arith.constant 0 : index
      %58 = vector.load %arg10[%c0_40, %c0_41] : memref<1x4xf32, #tpu.memory_space<vmem>>, vector<1x4xf32>
      tpu.vector_store %arg10[%c0_40, %c0_41], %57 {strides = array<i32>} : memref<1x4xf32, #tpu.memory_space<vmem>>, vector<1x4xf32>,
      %cst_42 = arith.constant 0.000000e+00 : f32
      %59 = vector.broadcast %cst_42 : f32 to vector<4x32xf32>
      %c0_43 = arith.constant 0 : index
      %c0_44 = arith.constant 0 : index
      %60 = vector.load %arg7[%c0_43, %c0_44] : memref<4x32xf32, #tpu.memory_space<vmem>>, vector<4x32xf32>
      tpu.vector_store %arg7[%c0_43, %c0_44], %59 {strides = array<i32>} : memref<4x32xf32, #tpu.memory_space<vmem>>, vector<4x32xf32>,
    } else {
    }
    %c0 = arith.constant 0 : index
    %c0_1 = arith.constant 0 : index
    %c0_2 = arith.constant 0 : index
    %3 = vector.load %arg5[%c0, %c0_1, %c0_2] : memref<8x4x32xf32, #tpu.memory_space<vmem>>, vector<8x4x32xf32>
    %c0_3 = arith.constant 0 : index
    %c0_4 = arith.constant 0 : index
    %4 = vector.load %arg8[%c0_3, %c0_4] : memref<4x32xf32, #tpu.memory_space<vmem>>, vector<4x32xf32>
    %c0_5 = arith.constant 0 : index
    %c0_6 = arith.constant 0 : index
    %5 = vector.load %arg6[%c0_5, %c0_6] : memref<4x8xi8, #tpu.memory_space<vmem>>, vector<4x8xi8>
    %6 = arith.sitofp %5 : vector<4x8xi8> to vector<4x8xf32>
    %7 = tpu.transpose %6, [1, 0] : vector<4x8xf32> -> vector<8x4xf32>
    %cst = arith.constant 5.000000e-01 : f32
    %8 = vector.broadcast %cst : f32 to vector<8x4xf32>
    %9 = arith.cmpf ogt, %7, %8 : vector<8x4xf32>
    %10 = vector.shape_cast %4 : vector<4x32xf32> to vector<1x4x32xf32>
    %11 = vector.broadcast %10 : vector<1x4x32xf32> to vector<8x4x32xf32>
    %12 = arith.mulf %3, %11 : vector<8x4x32xf32>
    %cst_7 = arith.constant dense<0.000000e+00> : vector<8x4xf32>
    %13 = vector.multi_reduction <add>, %12, %cst_7 [2] : vector<8x4x32xf32> to vector<8x4xf32>
    %cst_8 = arith.constant -1.000000e+30 : f32
    %14 = vector.broadcast %cst_8 : f32 to vector<8x4xf32>
    %15 = arith.select %9, %14, %13 : vector<8x4xi1>, vector<8x4xf32>
    %c0_9 = arith.constant 0 : index
    %c0_10 = arith.constant 0 : index
    %16 = vector.load %arg9[%c0_9, %c0_10] : memref<1x4xf32, #tpu.memory_space<vmem>>, vector<1x4xf32>
    %cst_11 = arith.constant dense<0xFF800000> : vector<4xf32>
    %17 = vector.multi_reduction <maximumf>, %15, %cst_11 [0] : vector<8x4xf32> to vector<4xf32>
    %18 = vector.shape_cast %17 : vector<4xf32> to vector<1x4xf32>
    %19 = arith.maximumf %16, %18 : vector<1x4xf32>
    %20 = arith.subf %16, %19 : vector<1x4xf32>
    %21 = math.exp %20 : vector<1x4xf32>
    %22 = vector.broadcast %19 : vector<1x4xf32> to vector<8x4xf32>
    %23 = arith.subf %15, %22 : vector<8x4xf32>
    %24 = math.exp %23 : vector<8x4xf32>
    %cst_12 = arith.constant 0.000000e+00 : f32
    %25 = vector.broadcast %cst_12 : f32 to vector<8x4xf32>
    %26 = arith.select %9, %25, %24 : vector<8x4xi1>, vector<8x4xf32>
    %c0_13 = arith.constant 0 : index
    %c0_14 = arith.constant 0 : index
    %27 = vector.load %arg10[%c0_13, %c0_14] : memref<1x4xf32, #tpu.memory_space<vmem>>, vector<1x4xf32>
    %28 = arith.mulf %21, %27 : vector<1x4xf32>
    %cst_15 = arith.constant dense<0.000000e+00> : vector<4xf32>
    %29 = vector.multi_reduction <add>, %26, %cst_15 [0] : vector<8x4xf32> to vector<4xf32>
    %30 = vector.shape_cast %29 : vector<4xf32> to vector<1x4xf32>
    %31 = arith.addf %28, %30 : vector<1x4xf32>
    %c0_16 = arith.constant 0 : index
    %c0_17 = arith.constant 0 : index
    %32 = vector.load %arg10[%c0_16, %c0_17] : memref<1x4xf32, #tpu.memory_space<vmem>>, vector<1x4xf32>
    tpu.vector_store %arg10[%c0_16, %c0_17], %31 {strides = array<i32>} : memref<1x4xf32, #tpu.memory_space<vmem>>, vector<1x4xf32>,
    %33 = tpu.transpose %21, [1, 0] : vector<1x4xf32> -> vector<4x1xf32>
    %c0_18 = arith.constant 0 : index
    %c0_19 = arith.constant 0 : index
    %34 = vector.load %arg7[%c0_18, %c0_19] : memref<4x32xf32, #tpu.memory_space<vmem>>, vector<4x32xf32>
    %35 = vector.broadcast %33 : vector<4x1xf32> to vector<4x32xf32>
    %36 = arith.mulf %35, %34 : vector<4x32xf32>
    %37 = vector.shape_cast %26 : vector<8x4xf32> to vector<8x4x1xf32>
    %38 = vector.broadcast %37 : vector<8x4x1xf32> to vector<8x4x32xf32>
    %39 = arith.mulf %38, %3 : vector<8x4x32xf32>
    %cst_20 = arith.constant dense<0.000000e+00> : vector<4x32xf32>
    %40 = vector.multi_reduction <add>, %39, %cst_20 [0] : vector<8x4x32xf32> to vector<4x32xf32>
    %41 = arith.addf %36, %40 : vector<4x32xf32>
    %c0_21 = arith.constant 0 : index
    %c0_22 = arith.constant 0 : index
    %42 = vector.load %arg7[%c0_21, %c0_22] : memref<4x32xf32, #tpu.memory_space<vmem>>, vector<4x32xf32>
    tpu.vector_store %arg7[%c0_21, %c0_22], %41 {strides = array<i32>} : memref<4x32xf32, #tpu.memory_space<vmem>>, vector<4x32xf32>,
    %c0_23 = arith.constant 0 : index
    %c0_24 = arith.constant 0 : index
    %43 = vector.load %arg9[%c0_23, %c0_24] : memref<1x4xf32, #tpu.memory_space<vmem>>, vector<1x4xf32>
    tpu.vector_store %arg9[%c0_23, %c0_24], %19 {strides = array<i32>} : memref<1x4xf32, #tpu.memory_space<vmem>>, vector<1x4xf32>,
    %c0_i32_25 = arith.constant 0 : i32
    %44 = arith.cmpi eq, %arg1, %c0_i32_25 : i32
    %45 = arith.extui %44 : i1 to i32
    %c0_i32_26 = arith.constant 0 : i32
    %46 = arith.cmpi ne, %45, %c0_i32_26 : i32
    scf.if %46 {
      %c0_27 = arith.constant 0 : index
      %c0_28 = arith.constant 0 : index
      %47 = vector.load %arg10[%c0_27, %c0_28] : memref<1x4xf32, #tpu.memory_space<vmem>>, vector<1x4xf32>
      %cst_29 = arith.constant 0.000000e+00 : f32
      %48 = vector.broadcast %cst_29 : f32 to vector<1x4xf32>
      %49 = arith.cmpf ogt, %47, %48 : vector<1x4xf32>
      %cst_30 = arith.constant 1.000000e+00 : f32
      %50 = vector.broadcast %cst_30 : f32 to vector<1x4xf32>
      %51 = arith.select %49, %47, %50 : vector<1x4xi1>, vector<1x4xf32>
      %c0_31 = arith.constant 0 : index
      %c0_32 = arith.constant 0 : index
      %52 = vector.load %arg7[%c0_31, %c0_32] : memref<4x32xf32, #tpu.memory_space<vmem>>, vector<4x32xf32>
      %53 = tpu.reciprocal %51 : vector<1x4xf32> -> vector<1x4xf32>
      %54 = tpu.transpose %53, [1, 0] : vector<1x4xf32> -> vector<4x1xf32>
      %55 = vector.broadcast %54 : vector<4x1xf32> to vector<4x32xf32>
      %56 = arith.mulf %52, %55 : vector<4x32xf32>
      %c0_33 = arith.constant 0 : index
      %c0_34 = arith.constant 0 : index
      %57 = vector.load %arg7[%c0_33, %c0_34] : memref<4x32xf32, #tpu.memory_space<vmem>>, vector<4x32xf32>
      tpu.vector_store %arg7[%c0_33, %c0_34], %56 {strides = array<i32>} : memref<4x32xf32, #tpu.memory_space<vmem>>, vector<4x32xf32>,
    } else {
    }
    return
  }
  func.func @transform_0(%arg0: i32, %arg1: i32) -> (i32, i32) {
    %c0_i32 = arith.constant 0 : i32
    %c0_i32_0 = arith.constant 0 : i32
    return %arg0, %c0_i32 : i32, i32
  }
  func.func @transform_1(%arg0: i32, %arg1: i32) -> (i32, i32) {
    %c0_i32 = arith.constant 0 : i32
    %c0_i32_0 = arith.constant 0 : i32
    %c0_i32_1 = arith.constant 0 : i32
    return %c0_i32, %c0_i32_0 : i32, i32
  }
  func.func @transform_2(%arg0: i32, %arg1: i32) -> (i32, i32) {
    %c0_i32 = arith.constant 0 : i32
    %c0_i32_0 = arith.constant 0 : i32
    %c0_i32_1 = arith.constant 0 : i32
    return %c0_i32, %c0_i32_0 : i32, i32
  }
  func.func @transform_3(%arg0: i32, %arg1: i32) -> (i32, i32, i32) {
    %c0_i32 = arith.constant 0 : i32
    %c0_i32_0 = arith.constant 0 : i32
    return %arg1, %arg0, %c0_i32 : i32, i32, i32
  }
  func.func @transform_4(%arg0: i32, %arg1: i32) -> (i32, i32) {
    %c0_i32 = arith.constant 0 : i32
    return %arg0, %arg1 : i32, i32
  }
  func.func @transform_5(%arg0: i32, %arg1: i32) -> (i32, i32) {
    %c0_i32 = arith.constant 0 : i32
    %c0_i32_0 = arith.constant 0 : i32
    return %arg0, %c0_i32 : i32, i32
  }
}

</mosaic_0001>

<llo_original>
// kernel: tpu_custom_call.1
$region0: #{tpu_custom_call.1}
  #allocation0 [shape = 'u32[]', space=smem, size = 0x4, offset = 0x4, fixed_abs, tag = 'smem constant byte address 0x4 - core index']
  #allocation1 [shape = 'u32[144,128]{1,0:T(1,128)}', space=vmem, size = 0x12000, scoped, tag = 'internal scratch']
  #allocation2 [shape = 'f32[4,32]{1,0:T(4,128)}', space=vmem, size = 0x800, scoped, tag = 'scratch operand']
  #allocation3 [shape = 'f32[1,4]{1,0:T(1,128)}', space=vmem, size = 0x200, scoped, tag = 'scratch operand']
  #allocation4 [shape = 'f32[1,4]{1,0:T(1,128)}', space=vmem, size = 0x200, scoped, tag = 'scratch operand']
  %s0 = inlined_call_operand.hbm [shape: f32[4,32], index: 0, kind: input, shape index: {}]
  %s1 = inlined_call_operand.hbm [shape: f32[32,32], index: 1, kind: input, shape index: {}]
  %s2 = inlined_call_operand.vmem [shape: f32[1,32], index: 2, kind: input, shape index: {}]
  %s3 = inlined_call_operand.hbm [shape: f32[8,4,32], index: 3, kind: input, shape index: {}]
  %s4 = inlined_call_operand.vmem [shape: s8[4,8], index: 4, kind: input, shape index: {}]
  %s5 = inlined_call_operand.hbm [shape: f32[4,32], index: 5, kind: output, shape index: {}]
  %s6 = sld [smem:[#allocation0]]
  $region50: #{tpu_custom_call.1} parent=0
    _
  %s8 = ssub.s32 1, %s6
  %s9 = scalar_select 0, %s8, %s6
  $region1: #{tpu_custom_call.1} parent=0
    #allocation5 [shape = 'u8[2048]{0}', space=vmem, size = 0x800, scoped, tag = 'input window, operand 0, single buffered']
    #allocation6 [shape = 's32[1]{0}', space=sflag, size = 0x4, scoped, tag = 'scoped memory for tpu_custom_call.1']
    #allocation7 [shape = 's32[1]{0}', space=sflag, size = 0x4, scoped, tag = 'scoped memory for tpu_custom_call.1']
    #allocation8 [shape = 'u8[16384]{0}', space=vmem, size = 0x4000, scoped, tag = 'input window, operand 1, single buffered']
    #allocation9 [shape = 's32[1]{0}', space=sflag, size = 0x4, scoped, tag = 'scoped memory for tpu_custom_call.1']
    #allocation10 [shape = 'u8[16384]{0}', space=vmem, size = 0x4000, scoped, tag = 'input window, operand 3, single buffered']
    #allocation11 [shape = 'u8[2048]{0}', space=vmem, size = 0x800, scoped, tag = 'output window, operand 0, single buffered']
    %10 = vsyncpa [#allocation6], 0
    %11 = vsyncpa [#allocation9], 0
    %12 = vsyncpa [#allocation7], 0
    // Predicated region
    $region2: #{tpu_custom_call.1} parent=1 // pred_check
      _
    $region3: #{tpu_custom_call.1} parent=1 // pred_check_branch
      %14 = sbr.rel (0) target = $region5
    $region4: #{tpu_custom_call.1} parent=1 // pred_region
      %s16 = ssub.s32 64, 64
      %17 = vsyncadd [#allocation6], %s16
      %s19 = sshll.u32 [#allocation5], 4
      %s20 = int_to_ptr.vmem [resolvable:$true] %s19
      %22 = dma.hbm_to_vmem [thread:$0]  %s0, 64, %s20, [#allocation6]
    $region5: #{tpu_custom_call.1} parent=1 // pred_fallthru
      _
    // Predicated region
    $region6: #{tpu_custom_call.1} parent=1 // pred_check
      _
    $region7: #{tpu_custom_call.1} parent=1 // pred_check_branch
      %24 = sbr.rel (0) target = $region9
    $region8: #{tpu_custom_call.1} parent=1 // pred_region
      %s26 = ssub.s32 512, 512
      %27 = vsyncadd [#allocation9], %s26
      %s28 = sshll.u32 [#allocation8], 4
      %s29 = int_to_ptr.vmem [resolvable:$true] %s28
      %34 = dma.hbm_to_vmem [thread:$0]  %s1, 512, %s29, [#allocation9], 128, 128, 8
    $region9: #{tpu_custom_call.1} parent=1 // pred_fallthru
      _
    // Predicated region
    $region10: #{tpu_custom_call.1} parent=1 // pred_check
      _
    $region11: #{tpu_custom_call.1} parent=1 // pred_check_branch
      %36 = sbr.rel (0) target = $region13
    $region12: #{tpu_custom_call.1} parent=1 // pred_region
      _
    $region13: #{tpu_custom_call.1} parent=1 // pred_fallthru
      _
    // Predicated region
    $region14: #{tpu_custom_call.1} parent=1 // pred_check
      _
    $region15: #{tpu_custom_call.1} parent=1 // pred_check_branch
      %38 = sbr.rel (0) target = $region17
    $region16: #{tpu_custom_call.1} parent=1 // pred_region
      %s40 = ssub.s32 512, 512
      %41 = vsyncadd [#allocation9], %s40
      %s42 = sshll.u32 [#allocation10], 4
      %s43 = int_to_ptr.vmem [resolvable:$true] %s42
      %48 = dma.hbm_to_vmem [thread:$0]  %s3, 512, %s43, [#allocation9], 64, 64, 4
    $region17: #{tpu_custom_call.1} parent=1 // pred_fallthru
      _
    // Predicated region
    $region18: #{tpu_custom_call.1} parent=1 // pred_check
      _
    $region19: #{tpu_custom_call.1} parent=1 // pred_check_branch
      %50 = sbr.rel (0) target = $region21
    $region20: #{tpu_custom_call.1} parent=1 // pred_region
      _
    $region21: #{tpu_custom_call.1} parent=1 // pred_fallthru
      _
    // Predicated region
    $region22: #{tpu_custom_call.1} parent=1 // pred_check
      _
    $region23: #{tpu_custom_call.1} parent=1 // pred_check_branch
      %52 = sbr.rel (0) target = $region25
    $region24: #{tpu_custom_call.1} parent=1 // pred_region
      %53 = dma.done [#allocation6], 64
    $region25: #{tpu_custom_call.1} parent=1 // pred_fallthru
      _
    // Predicated region
    $region26: #{tpu_custom_call.1} parent=1 // pred_check
      _
    $region27: #{tpu_custom_call.1} parent=1 // pred_check_branch
      %55 = sbr.rel (0) target = $region29
    $region28: #{tpu_custom_call.1} parent=1 // pred_region
      %56 = dma.done [#allocation9], 512
    $region29: #{tpu_custom_call.1} parent=1 // pred_fallthru
      _
    // Predicated region
    $region30: #{tpu_custom_call.1} parent=1 // pred_check
      _
    $region31: #{tpu_custom_call.1} parent=1 // pred_check_branch
      %58 = sbr.rel (0) target = $region33
    $region32: #{tpu_custom_call.1} parent=1 // pred_region
      %59 = dma.done [#allocation9], 512
    $region33: #{tpu_custom_call.1} parent=1 // pred_fallthru
      _
    %p60 = scmp.eq.s32.totalorder 0, 0
    // Predicated region
    $region34: #{tpu_custom_call.1} parent=1 // pred_check
      %p61 = pneg %p60
    $region35: #{tpu_custom_call.1} parent=1 // pred_check_branch
      %63 = sbr.rel (%p61) target = $region37
    $region36: #{tpu_custom_call.1} parent=1 // pred_region
      %v64 = vld [vmem:[#allocation5] sm:$0xf]
      %v65 = vld [vmem:[#allocation8] sm:$0xff]
      %v66 = vld [vmem:[#allocation8 + $0x8] sm:$0xff]
      %v67 = vld [vmem:[#allocation8 + $0x10] sm:$0xff]
      %v68 = vld [vmem:[#allocation8 + $0x18] sm:$0xff]
      %v69 = vld [vmem:[%s2] sm:$0x1]
      %v71 = vlaneseq
      %v72 = vshrl.u32 %v71, 7
      %v73 = vsub.s32 0, %v72
      %v74 = vrot.slane %v69, %v73
      %vm76 = vcmask 261120
      %v78 = vsel %vm76, %v64, 0
      %v81 = vsel %vm76, %v65, 0
      %v84 = vsel %vm76, %v66, 0
      %v87 = vsel %vm76, %v67, 0
      %v90 = vsel %vm76, %v68, 0
      %92 = vmatprep.subr.mxu0 0.0
      %93 = vmatpush1.xpose.msra.mxu0 %v81
      %94 = vmatprep.subr.mxu0 0.0
      %95 = vmatpush1.xpose.msra.mxu0 %v84
      %96 = vmatprep.subr.mxu0 0.0
      %97 = vmatpush1.xpose.msra.mxu0 %v87
      %98 = vmatprep.subr.mxu0 0.0
      %99 = vmatpush1.xpose.msra.mxu0 %v90
      %100 = vmatprep.subr.mxu0 0.0
      %101 = vmatpush1.xpose.msra.mxu0 0.0
      %102 = vmatprep.subr.mxu0 0.0
      %103 = vmatpush1.xpose.msra.mxu0 0.0
      %104 = vmatprep.subr.mxu0 0.0
      %105 = vmatpush1.xpose.msra.mxu0 0.0
      %106 = vmatprep.subr.mxu0 0.0
      %107 = vmatpush1.xpose.msra.mxu0 0.0
      %108 = vmatprep.subr.mxu0 0.0
      %109 = vmatpush1.xpose.msra.mxu0 0.0
      %110 = vmatprep.subr.mxu0 0.0
      %111 = vmatpush1.xpose.msra.mxu0 0.0
      %112 = vmatprep.subr.mxu0 0.0
      %113 = vmatpush1.xpose.msra.mxu0 0.0
      %114 = vmatprep.subr.mxu0 0.0
      %115 = vmatpush1.xpose.msra.mxu0 0.0
      %116 = vmatprep.subr.mxu0 0.0
      %117 = vmatpush1.xpose.msra.mxu0 0.0
      %118 = vmatprep.subr.mxu0 0.0
      %119 = vmatpush1.xpose.msra.mxu0 0.0
      %120 = vmatprep.subr.mxu0 0.0
      %121 = vmatpush1.xpose.msra.mxu0 0.0
      %122 = vmatprep.subr.mxu0 0.0
      %123 = vmatpush1.xpose.msra.mxu0 0.0
      %124 = vmatprep.subr.mxu0 0.0
      %125 = vmatpush1.xpose.msra.mxu0 0.0
      %126 = vmatprep.subr.mxu0 0.0
      %127 = vmatpush1.xpose.msra.mxu0 0.0
      %128 = vmatprep.subr.mxu0 0.0
      %129 = vmatpush1.xpose.msra.mxu0 0.0
      %130 = vmatprep.subr.mxu0 0.0
      %131 = vmatpush1.xpose.msra.mxu0 0.0
      %132 = vmatprep.subr.mxu0 0.0
      %133 = vmatpush1.xpose.msra.mxu0 0.0
      %134 = vmatprep.subr.mxu0 0.0
      %135 = vmatpush1.xpose.msra.mxu0 0.0
      %136 = vmatprep.subr.mxu0 0.0
      %137 = vmatpush1.xpose.msra.mxu0 0.0
      %138 = vmatprep.subr.mxu0 0.0
      %139 = vmatpush1.xpose.msra.mxu0 0.0
      %140 = vmatprep.subr.mxu0 0.0
      %141 = vmatpush1.xpose.msra.mxu0 0.0
      %142 = vmatprep.subr.mxu0 0.0
      %143 = vmatpush1.xpose.msra.mxu0 0.0
      %144 = vmatprep.subr.mxu0 0.0
      %145 = vmatpush1.xpose.msra.mxu0 0.0
      %146 = vmatprep.subr.mxu0 0.0
      %147 = vmatpush1.xpose.msra.mxu0 0.0
      %148 = vmatprep.subr.mxu0 0.0
      %149 = vmatpush1.xpose.msra.mxu0 0.0
      %150 = vmatprep.subr.mxu0 0.0
      %151 = vmatpush1.xpose.msra.mxu0 0.0
      %152 = vmatprep.subr.mxu0 0.0
      %153 = vmatpush1.xpose.msra.mxu0 0.0
      %154 = vmatprep.subr.mxu0 0.0
      %155 = vmatpush1.xpose.msra.mxu0 0.0
      %156 = vmatprep.mubr.f32.mxu0 0.0
      %157 = vmatmul.mubr.f32.gmra.mrb[0].mxu0 %v78
      %v158 = vpop.f32.mrb[0].mxu0
      %v159 = vadd.f32 %v74, %v158
      %v160 = vpop.f32.mrb[0].mxu0
      %161 = vdwg.mxu0
      %v162 = vtanh.pop %v159
      %vm163 = vcmask 257024
      %164 = vst.msk [vmem:[#allocation2] sm:$0xf] %vm163, %v162
      %vm165 = vcmask 24576
      %166 = vst.msk [vmem:[#allocation3] sm:$0x1] %vm165, -1e+30
      %167 = vst.msk [vmem:[#allocation4] sm:$0x1] %vm165, 0.0
      %168 = vst.msk [vmem:[#allocation11] sm:$0xf] %vm163, 0.0
    $region37: #{tpu_custom_call.1} parent=1 // pred_fallthru
      _
    %v169 = vld [vmem:[#allocation10] sm:$0xf]
    %v170 = vld [vmem:[#allocation10 + $0x4] sm:$0xf]
    %v171 = vld [vmem:[#allocation10 + $0x8] sm:$0xf]
    %v172 = vld [vmem:[#allocation10 + $0xc] sm:$0xf]
    %v173 = vld [vmem:[#allocation10 + $0x10] sm:$0xf]
    %v174 = vld [vmem:[#allocation10 + $0x14] sm:$0xf]
    %v175 = vld [vmem:[#allocation10 + $0x18] sm:$0xf]
    %v176 = vld [vmem:[#allocation10 + $0x1c] sm:$0xf]
    %v177 = vld [vmem:[#allocation2] sm:$0xf]
    %v178 = vld [vmem:[%s4] sm:$0x1]
    %v179 = vunpack.c.0.s8 %v178
    %v180 = vcvt.s32.f32 %v179
    %181 = vxpose.xlu0.b32.start [1/16] %v180, 128
    %182 = vxpose.xlu0.b32.cont [2/16] 0.0, 128
    %183 = vxpose.xlu0.b32.cont [3/16] 0.0, 128
    %184 = vxpose.xlu0.b32.cont [4/16] 0.0, 128
    %185 = vxpose.xlu0.b32.cont [5/16] 0.0, 128
    %186 = vxpose.xlu0.b32.cont [6/16] 0.0, 128
    %187 = vxpose.xlu0.b32.cont [7/16] 0.0, 128
    %188 = vxpose.xlu0.b32.cont [8/16] 0.0, 128
    %189 = vxpose.xlu0.b32.cont [9/16] 0.0, 128
    %190 = vxpose.xlu0.b32.cont [10/16] 0.0, 128
    %191 = vxpose.xlu0.b32.cont [11/16] 0.0, 128
    %192 = vxpose.xlu0.b32.cont [12/16] 0.0, 128
    %193 = vxpose.xlu0.b32.cont [13/16] 0.0, 128
    %194 = vxpose.xlu0.b32.cont [14/16] 0.0, 128
    %195 = vxpose.xlu0.b32.cont [15/16] 0.0, 128
    %196 = vxpose.xlu0.b32.end [16/16] 0.0, 128
    %v197 = vpop.trf.xlu0
    %v198 = vpop.trf.xlu0
    %v199 = vpop.trf.xlu0
    %v200 = vpop.trf.xlu0
    %v201 = vpop.trf.xlu0
    %v202 = vpop.trf.xlu0
    %v203 = vpop.trf.xlu0
    %v204 = vpop.trf.xlu0
    %v205 = vpop.trf.xlu0
    %v206 = vpop.trf.xlu0
    %v207 = vpop.trf.xlu0
    %v208 = vpop.trf.xlu0
    %v209 = vpop.trf.xlu0
    %v210 = vpop.trf.xlu0
    %v211 = vpop.trf.xlu0
    %v212 = vpop.trf.xlu0
    %vm213 = vcmp.gt.f32.partialorder %v197, 0.5
    %v214 = vmul.f32 %v169, %v177
    %v215 = vmul.f32 %v170, %v177
    %v216 = vmul.f32 %v171, %v177
    %v217 = vmul.f32 %v172, %v177
    %v218 = vmul.f32 %v173, %v177
    %v219 = vmul.f32 %v174, %v177
    %v220 = vmul.f32 %v175, %v177
    %v221 = vmul.f32 %v176, %v177
    %vm222 = vcmask 257024
    %v223 = vsel %vm222, %v214, 0.0
    %224 = vadd.xlane.f32.xlu0 %v223
    %v225 = vpop.xlane.xlu0 %224
    %v226 = vsel %vm222, %v215, 0.0
    %227 = vadd.xlane.f32.xlu0 %v226
    %v228 = vpop.xlane.xlu0 %227
    %v229 = vsel %vm222, %v216, 0.0
    %230 = vadd.xlane.f32.xlu0 %v229
    %v231 = vpop.xlane.xlu0 %230
    %v232 = vsel %vm222, %v217, 0.0
    %233 = vadd.xlane.f32.xlu0 %v232
    %v234 = vpop.xlane.xlu0 %233
    %v235 = vsel %vm222, %v218, 0.0
    %236 = vadd.xlane.f32.xlu0 %v235
    %v237 = vpop.xlane.xlu0 %236
    %v238 = vsel %vm222, %v219, 0.0
    %239 = vadd.xlane.f32.xlu0 %v238
    %v240 = vpop.xlane.xlu0 %239
    %v241 = vsel %vm222, %v220, 0.0
    %242 = vadd.xlane.f32.xlu0 %v241
    %v243 = vpop.xlane.xlu0 %242
    %v244 = vsel %vm222, %v221, 0.0
    %245 = vadd.xlane.f32.xlu0 %v244
    %v246 = vpop.xlane.xlu0 %245
    %v255 = vlaneseq
    %v256 = vand.u32 %v255, 127
    %v257 = vlaneseq
    %v258 = vshrl.u32 %v257, 7
    %v259 = vsub.s32 %v256, %v258
    %v260 = vrot.slane %v225, %v259
    %v261 = vlaneseq
    %v262 = vshrl.u32 %v261, 7
    %v263 = vsub.s32 %v256, %v262
    %v264 = vrot.slane %v228, %v263
    %v265 = vlaneseq
    %v266 = vshrl.u32 %v265, 7
    %v267 = vsub.s32 %v256, %v266
    %v268 = vrot.slane %v231, %v267
    %v269 = vlaneseq
    %v270 = vshrl.u32 %v269, 7
    %v271 = vsub.s32 %v256, %v270
    %v272 = vrot.slane %v234, %v271
    %v273 = vlaneseq
    %v274 = vshrl.u32 %v273, 7
    %v275 = vsub.s32 %v256, %v274
    %v276 = vrot.slane %v237, %v275
    %v277 = vlaneseq
    %v278 = vshrl.u32 %v277, 7
    %v279 = vsub.s32 %v256, %v278
    %v280 = vrot.slane %v240, %v279
    %v281 = vlaneseq
    %v282 = vshrl.u32 %v281, 7
    %v283 = vsub.s32 %v256, %v282
    %v284 = vrot.slane %v243, %v283
    %v285 = vlaneseq
    %v286 = vshrl.u32 %v285, 7
    %v287 = vsub.s32 %v256, %v286
    %v288 = vrot.slane %v246, %v287
    %vm289 = vcmask 1041409
    %v290 = vsel %vm289, %v264, %v260
    %vm291 = vcmask 1042434
    %v292 = vsel %vm291, %v268, %v290
    %vm293 = vcmask 1043459
    %v294 = vsel %vm293, %v272, %v292
    %vm295 = vcmask 1044484
    %v296 = vsel %vm295, %v276, %v294
    %vm297 = vcmask 1045509
    %v298 = vsel %vm297, %v280, %v296
    %vm299 = vcmask 1046534
    %v300 = vsel %vm299, %v284, %v298
    %vm301 = vcmask 1047559
    %v302 = vsel %vm301, %v288, %v300
    %v304 = vsel %vm213, -1e+30, %v302
    %v305 = vld [vmem:[#allocation3] sm:$0x1]
    %vm306 = vcmask 31744
    %v307 = vsel %vm306, %v304, -inf
    %v308 = vrot.slane %v307, 4
    %v309 = vmax.f32 %v307, %v308
    %v310 = vrot.slane %v309, 2
    %v311 = vmax.f32 %v309, %v310
    %v312 = vrot.slane %v311, 1
    %v313 = vmax.f32 %v311, %v312
    %v314 = vmax.f32 %v305, %v313
    %v315 = vsub.f32 %v305, %v314
    %v316 = vmul.f32 %v315, 1.442695
    %v317 = vpow.pop %v316
    %v319 = vlaneseq
    %v320 = vshrl.u32 %v319, 7
    %v321 = vsub.s32 0, %v320
    %v322 = vrot.slane %v314, %v321
    %v324 = vsub.f32 %v304, %v322
    %v325 = vmul.f32 %v324, 1.442695
    %v326 = vpow.pop %v325
    %v327 = vsel %vm213, 0.0, %v326
    %v328 = vld [vmem:[#allocation4] sm:$0x1]
    %v329 = vmul.f32 %v317, %v328
    %v330 = vsel %vm306, %v327, 0.0
    %v331 = vrot.slane %v330, 4
    %v332 = vadd.f32 %v330, %v331
    %v333 = vrot.slane %v332, 2
    %v334 = vadd.f32 %v332, %v333
    %v335 = vrot.slane %v334, 1
    %v336 = vadd.f32 %v334, %v335
    %v337 = vadd.f32 %v329, %v336
    %vm338 = vcmask 24576
    %339 = vst.msk [vmem:[#allocation4] sm:$0x1] %vm338, %v337
    %340 = vxpose.xlu0.b32.start [1/16] %v317, 128
    %341 = vxpose.xlu0.b32.cont [2/16] 0.0, 128
    %342 = vxpose.xlu0.b32.cont [3/16] 0.0, 128
    %343 = vxpose.xlu0.b32.cont [4/16] 0.0, 128
    %344 = vxpose.xlu0.b32.cont [5/16] 0.0, 128
    %345 = vxpose.xlu0.b32.cont [6/16] 0.0, 128
    %346 = vxpose.xlu0.b32.cont [7/16] 0.0, 128
    %347 = vxpose.xlu0.b32.cont [8/16] 0.0, 128
    %348 = vxpose.xlu0.b32.cont [9/16] 0.0, 128
    %349 = vxpose.xlu0.b32.cont [10/16] 0.0, 128
    %350 = vxpose.xlu0.b32.cont [11/16] 0.0, 128
    %351 = vxpose.xlu0.b32.cont [12/16] 0.0, 128
    %352 = vxpose.xlu0.b32.cont [13/16] 0.0, 128
    %353 = vxpose.xlu0.b32.cont [14/16] 0.0, 128
    %354 = vxpose.xlu0.b32.cont [15/16] 0.0, 128
    %355 = vxpose.xlu0.b32.end [16/16] 0.0, 128
    %v356 = vpop.trf.xlu0
    %v357 = vpop.trf.xlu0
    %v358 = vpop.trf.xlu0
    %v359 = vpop.trf.xlu0
    %v360 = vpop.trf.xlu0
    %v361 = vpop.trf.xlu0
    %v362 = vpop.trf.xlu0
    %v363 = vpop.trf.xlu0
    %v364 = vpop.trf.xlu0
    %v365 = vpop.trf.xlu0
    %v366 = vpop.trf.xlu0
    %v367 = vpop.trf.xlu0
    %v368 = vpop.trf.xlu0
    %v369 = vpop.trf.xlu0
    %v370 = vpop.trf.xlu0
    %v371 = vpop.trf.xlu0
    %v372 = vld [vmem:[#allocation11] sm:$0xf]
    %374 = vset.pattern.permute.xlu0 0
    %375 = vperm.xlu0 %374, %v356
    %v376 = vpop.permute.xlu0 %375
    %v378 = vmul.f32 %v376, %v372
    %v379 = vlaneseq
    %v380 = vshrl.u32 %v379, 7
    %v381 = vsub.s32 0, %v380
    %v382 = vrot.slane %v327, %v381
    %384 = vbcast.lane.b32.xlu0 %v382, 256
    %v385 = vpop.permute.xlu0 %384
    %v386 = vlaneseq
    %v387 = vshrl.u32 %v386, 7
    %v388 = vsub.s32 1, %v387
    %v389 = vrot.slane %v327, %v388
    %391 = vbcast.lane.b32.xlu0 %v389, 256
    %v392 = vpop.permute.xlu0 %391
    %v393 = vlaneseq
    %v394 = vshrl.u32 %v393, 7
    %v395 = vsub.s32 2, %v394
    %v396 = vrot.slane %v327, %v395
    %398 = vbcast.lane.b32.xlu0 %v396, 256
    %v399 = vpop.permute.xlu0 %398
    %v400 = vlaneseq
    %v401 = vshrl.u32 %v400, 7
    %v402 = vsub.s32 3, %v401
    %v403 = vrot.slane %v327, %v402
    %405 = vbcast.lane.b32.xlu0 %v403, 256
    %v406 = vpop.permute.xlu0 %405
    %v407 = vlaneseq
    %v408 = vshrl.u32 %v407, 7
    %v409 = vsub.s32 4, %v408
    %v410 = vrot.slane %v327, %v409
    %412 = vbcast.lane.b32.xlu0 %v410, 256
    %v413 = vpop.permute.xlu0 %412
    %v414 = vlaneseq
    %v415 = vshrl.u32 %v414, 7
    %v416 = vsub.s32 5, %v415
    %v417 = vrot.slane %v327, %v416
    %419 = vbcast.lane.b32.xlu0 %v417, 256
    %v420 = vpop.permute.xlu0 %419
    %v421 = vlaneseq
    %v422 = vshrl.u32 %v421, 7
    %v423 = vsub.s32 6, %v422
    %v424 = vrot.slane %v327, %v423
    %426 = vbcast.lane.b32.xlu0 %v424, 256
    %v427 = vpop.permute.xlu0 %426
    %v428 = vlaneseq
    %v429 = vshrl.u32 %v428, 7
    %v430 = vsub.s32 7, %v429
    %v431 = vrot.slane %v327, %v430
    %433 = vbcast.lane.b32.xlu0 %v431, 256
    %v434 = vpop.permute.xlu0 %433
    %v435 = vmul.f32 %v385, %v169
    %v436 = vmul.f32 %v392, %v170
    %v437 = vmul.f32 %v399, %v171
    %v438 = vmul.f32 %v406, %v172
    %v439 = vmul.f32 %v413, %v173
    %v440 = vmul.f32 %v420, %v174
    %v441 = vmul.f32 %v427, %v175
    %v442 = vmul.f32 %v434, %v176
    %v443 = vsel %vm222, %v435, 0.0
    %v444 = vsel %vm222, %v436, 0.0
    %v445 = vadd.f32 %v443, %v444
    %v446 = vsel %vm222, %v437, 0.0
    %v447 = vadd.f32 %v445, %v446
    %v448 = vsel %vm222, %v438, 0.0
    %v449 = vadd.f32 %v447, %v448
    %v450 = vsel %vm222, %v439, 0.0
    %v451 = vadd.f32 %v449, %v450
    %v452 = vsel %vm222, %v440, 0.0
    %v453 = vadd.f32 %v451, %v452
    %v454 = vsel %vm222, %v441, 0.0
    %v455 = vadd.f32 %v453, %v454
    %v456 = vsel %vm222, %v442, 0.0
    %v457 = vadd.f32 %v455, %v456
    %v458 = vadd.f32 %v378, %v457
    %459 = vst.msk [vmem:[#allocation11] sm:$0xf] %vm222, %v458
    %460 = vst.msk [vmem:[#allocation3] sm:$0x1] %vm338, %v314
    // Predicated region
    $region38: #{tpu_custom_call.1} parent=1 // pred_check
      %p461 = pneg %p60
    $region39: #{tpu_custom_call.1} parent=1 // pred_check_branch
      %463 = sbr.rel (%p461) target = $region41
    $region40: #{tpu_custom_call.1} parent=1 // pred_region
      %v464 = vld [vmem:[#allocation4] sm:$0x1]
      %vm465 = vcmp.gt.f32.partialorder %v464, 0.0
      %v466 = vsel %vm465, %v464, 1.0
      %v467 = vld [vmem:[#allocation11] sm:$0xf]
      %v468 = vrcp.pop %v466
      %469 = vxpose.xlu0.b32.start [1/16] %v468, 128
      %470 = vxpose.xlu0.b32.cont [2/16] 0.0, 128
      %471 = vxpose.xlu0.b32.cont [3/16] 0.0, 128
      %472 = vxpose.xlu0.b32.cont [4/16] 0.0, 128
      %473 = vxpose.xlu0.b32.cont [5/16] 0.0, 128
      %474 = vxpose.xlu0.b32.cont [6/16] 0.0, 128
      %475 = vxpose.xlu0.b32.cont [7/16] 0.0, 128
      %476 = vxpose.xlu0.b32.cont [8/16] 0.0, 128
      %477 = vxpose.xlu0.b32.cont [9/16] 0.0, 128
      %478 = vxpose.xlu0.b32.cont [10/16] 0.0, 128
      %479 = vxpose.xlu0.b32.cont [11/16] 0.0, 128
      %480 = vxpose.xlu0.b32.cont [12/16] 0.0, 128
      %481 = vxpose.xlu0.b32.cont [13/16] 0.0, 128
      %482 = vxpose.xlu0.b32.cont [14/16] 0.0, 128
      %483 = vxpose.xlu0.b32.cont [15/16] 0.0, 128
      %484 = vxpose.xlu0.b32.end [16/16] 0.0, 128
      %v485 = vpop.trf.xlu0
      %v486 = vpop.trf.xlu0
      %v487 = vpop.trf.xlu0
      %v488 = vpop.trf.xlu0
      %v489 = vpop.trf.xlu0
      %v490 = vpop.trf.xlu0
      %v491 = vpop.trf.xlu0
      %v492 = vpop.trf.xlu0
      %v493 = vpop.trf.xlu0
      %v494 = vpop.trf.xlu0
      %v495 = vpop.trf.xlu0
      %v496 = vpop.trf.xlu0
      %v497 = vpop.trf.xlu0
      %v498 = vpop.trf.xlu0
      %v499 = vpop.trf.xlu0
      %v500 = vpop.trf.xlu0
      %502 = vset.pattern.permute.xlu0 0
      %503 = vperm.xlu0 %502, %v485
      %v504 = vpop.permute.xlu0 %503
      %v506 = vmul.f32 %v467, %v504
      %507 = vst.msk [vmem:[#allocation11] sm:$0xf] %vm222, %v506
    $region41: #{tpu_custom_call.1} parent=1 // pred_fallthru
      _
    // Predicated region
    $region42: #{tpu_custom_call.1} parent=1 // pred_check
      _
    $region43: #{tpu_custom_call.1} parent=1 // pred_check_branch
      %509 = sbr.rel (0) target = $region45
    $region44: #{tpu_custom_call.1} parent=1 // pred_region
      %s511 = ssub.s32 64, 64
      %512 = vsyncadd [#allocation7], %s511
      %s514 = sshll.u32 [#allocation11], 4
      %s515 = int_to_ptr.vmem [resolvable:$true] %s514
      %517 = dma.vmem_to_hbm [thread:$0]  %s515, 64, %s5, [#allocation7]
    $region45: #{tpu_custom_call.1} parent=1 // pred_fallthru
      _
    // Predicated region
    $region46: #{tpu_custom_call.1} parent=1 // pred_check
      _
    $region47: #{tpu_custom_call.1} parent=1 // pred_check_branch
      %519 = sbr.rel (0) target = $region49
    $region48: #{tpu_custom_call.1} parent=1 // pred_region
      %520 = dma.done [#allocation7], 64
    $region49: #{tpu_custom_call.1} parent=1 // pred_fallthru
      _
    %521 = vsyncpa [#allocation6], 1
    %522 = vsyncpa [#allocation9], 1
    %523 = vsyncpa [#allocation7], 1

</llo_original>
